<compile_context>
chip_gen: v5e
topology: v5e:2x2
jax: 0.10.0
libtpu: 0.0.40
codegen_flags: <defaults>
</compile_context>

<pallas_src>
import math

import jax
import jax.numpy as jnp
from jax.experimental import pallas as pl
from jax.experimental.pallas import tpu as pltpu

_VMEM = pl.BlockSpec(memory_space=pltpu.MemorySpace.VMEM)
_SMEM = pl.BlockSpec(memory_space=pltpu.MemorySpace.SMEM)


# --------------------------------------------------------------------------------------
# Host-side block-structure constants (avoid in-kernel int div/mod and relayouts).
#   sel[k, b]  = 1  iff  k // A == b          (B*A, B)
#   selT       = sel.T                         (B, B*A)
#   eye_t[k,j] = 1  iff  k %  A == j           (B*A, A)
# --------------------------------------------------------------------------------------
def build_masks(B, A):
    k = jnp.arange(B * A)
    b = jnp.arange(B)
    sel = (k[:, None] // A == b[None, :]).astype(jnp.float32)
    selT = sel.T
    eye_t = jnp.tile(jnp.eye(A, dtype=jnp.float32), (B, 1))
    return sel, selT, eye_t


# --------------------------------------------------------------------------------------
# Shared soft-attention body (whole batch at once, 2-D ops only).
# --------------------------------------------------------------------------------------
def _soft_att_body(att_flat, h, wa, ba, wh, bh, wd_row, bd, sel, selT, eye_t):
    f32 = jnp.float32
    v = jnp.dot(att_flat, wa, preferred_element_type=f32) + ba            # (B*A, A)
    hh = jnp.dot(h, wh, preferred_element_type=f32) + bh                  # (B, A)
    # hh[b, i] broadcast to row k = b*A + i, without lane<->sublane relayout.
    hh_col = jnp.sum(jnp.dot(sel, hh, preferred_element_type=f32) * eye_t,
                     axis=-1, keepdims=True)                              # (B*A, 1)
    d = jnp.tanh(v + hh_col)                                              # (B*A, A)
    # d2d as elementwise mul + lane reduce (no N=1 MXU matmul); bd comes from SMEM.
    scores = jnp.sum(d * wd_row, axis=-1, keepdims=True) + bd             # (B*A, 1)
    scores = scores - jnp.max(scores)      # global shift; per-group softmax invariant
    e = jnp.exp(scores)
    denom = jnp.dot(selT, e, preferred_element_type=f32)                  # (B, 1) per-batch sums
    w = e / jnp.dot(sel, denom, preferred_element_type=f32)               # (B*A, 1) softmax weights
    return jnp.dot(selT, att_flat * w, preferred_element_type=f32)        # (B, R)


# --------------------------------------------------------------------------------------
# Kernel 1: standalone lstm_soft_att forward (the spec module).
# --------------------------------------------------------------------------------------
def _soft_att_kernel(attf_ref, h_ref, sel_ref, selT_ref, eye_ref,
                     wa_ref, ba_ref, wh_ref, bh_ref, wd_ref, bd_ref, out_ref):
    out = _soft_att_body(attf_ref[...], h_ref[...],
                         wa_ref[...], ba_ref[...], wh_ref[...], bh_ref[...],
                         wd_ref[...], bd_ref[0],
                         sel_ref[...], selT_ref[...], eye_ref[...])
    out_ref[...] = out.astype(out_ref.dtype)


def lstm_soft_att(att, prev_h, p):
    """Pallas forward of the PyTorch `lstm_soft_att` module.  att: (B, A, R)."""
    B, A, R = att.shape
    att_flat = att.reshape(B * A, R)         # host-side reshape, free in XLA
    sel, selT, eye_t = build_masks(B, A)
    return pl.pallas_call(
        _soft_att_kernel,
        out_shape=jax.ShapeDtypeStruct((B, R), att.dtype),
        in_specs=[_VMEM] * 10 + [_SMEM],
        out_specs=_VMEM,
    )(att_flat, prev_h, sel, selT, eye_t,
      p["wa"], p["ba"], p["wh"], p["bh"], p["wd_row"], p["bd"])


# --------------------------------------------------------------------------------------
# Kernel 2: one fused stack layer
#   soft_att(prev_h) -> P parallel LSTM cores (stacked along N) -> soft_att(next_h)
#   -> residual -> projection + log_softmax (lane-dense padded output).
# --------------------------------------------------------------------------------------
def _fused_layer_kernel(xt_ref, c_ref, h_ref, attf_ref, sel_ref, selT_ref, eye_ref,
                        wa1_ref, ba1_ref, wh1_ref, bh1_ref, wd1_ref,
                        wi_ref, whc_ref, wac_ref, bc_ref,
                        wa2_ref, ba2_ref, wh2_ref, bh2_ref, wd2_ref,
                        wp_ref, bp_ref, bd_ref,
                        nc_ref, th_ref, lp_ref):
    B, R = c_ref.shape
    P = wi_ref.shape[1] // (4 * R)

    xt = xt_ref[...]
    prev_c = c_ref[...]
    prev_h = h_ref[...]
    att_flat = attf_ref[...]
    sel, selT, eye_t = sel_ref[...], selT_ref[...], eye_ref[...]

    # ---- attention #1 on prev_h ----
    att_res = _soft_att_body(att_flat, prev_h, wa1_ref[...], ba1_ref[...],
                             wh1_ref[...], bh1_ref[...], wd1_ref[...], bd_ref[0],
                             sel, selT, eye_t)

    # ---- P parallel LSTM cores: weights stacked along N, gates in one pass per operand ----
    sums = (jnp.dot(xt, wi_ref[...], preferred_element_type=jnp.float32)
            + jnp.dot(prev_h, whc_ref[...], preferred_element_type=jnp.float32)
            + jnp.dot(att_res, wac_ref[...], preferred_element_type=jnp.float32)
            + bc_ref[...])                                                # (B, P*4R)
    acc_c = jnp.zeros((B, R), jnp.float32)
    acc_h = jnp.zeros((B, R), jnp.float32)
    for p in range(P):                         # static unroll; pure VPU/EUP work
        g = sums[:, p * 4 * R:(p + 1) * 4 * R]
        in_gate = jax.nn.sigmoid(g[:, 0:R])
        forget_gate = jax.nn.sigmoid(g[:, R:2 * R])
        out_gate = jax.nn.sigmoid(g[:, 2 * R:3 * R])
        in_transform = jnp.tanh(g[:, 3 * R:4 * R])
        c_p = forget_gate * prev_c + in_gate * in_transform
        acc_c = acc_c + c_p
        acc_h = acc_h + out_gate * jnp.tanh(c_p)
    next_c = acc_c * (1.0 / P)
    next_h = acc_h * (1.0 / P)

    # ---- attention #2 on next_h + residual ----
    att_res2 = _soft_att_body(att_flat, next_h, wa2_ref[...], ba2_ref[...],
                              wh2_ref[...], bh2_ref[...], wd2_ref[...], bd_ref[1],
                              sel, selT, eye_t)
    top_h = att_res2 + next_h

    # ---- projection + log_softmax over a lane-dense (128-wide) padded slab ----
    logits = (jnp.dot(top_h, wp_ref[...], preferred_element_type=jnp.float32)
              + bp_ref[...])                                              # (B, O_pad)
    m = jnp.max(logits, axis=-1, keepdims=True)
    z = logits - m
    lse = jnp.log(jnp.sum(jnp.exp(z), axis=-1, keepdims=True))

    nc_ref[...] = next_c.astype(nc_ref.dtype)
    th_ref[...] = top_h.astype(th_ref.dtype)
    lp_ref[...] = (z - lse).astype(lp_ref.dtype)


def fused_layer(xt, prev_c, prev_h, att_flat, masks, a1, a2, core, proj):
    B, R = prev_c.shape
    o_pad = proj["w"].shape[1]
    sel, selT, eye_t = masks
    bd_pair = jnp.concatenate([a1["bd"], a2["bd"]], axis=0)   # (2,) scalars -> SMEM
    return pl.pallas_call(
        _fused_layer_kernel,
        out_shape=(jax.ShapeDtypeStruct((B, R), xt.dtype),
                   jax.ShapeDtypeStruct((B, R), xt.dtype),
                   jax.ShapeDtypeStruct((B, o_pad), xt.dtype)),
        in_specs=[_VMEM] * 23 + [_SMEM],
        out_specs=(_VMEM, _VMEM, _VMEM),
    )(xt, prev_c, prev_h, att_flat, sel, selT, eye_t,
      a1["wa"], a1["ba"], a1["wh"], a1["bh"], a1["wd_row"],
      core["wi"], core["wh"], core["wa"], core["b"],
      a2["wa"], a2["ba"], a2["wh"], a2["bh"], a2["wd_row"],
      proj["w"], proj["b"], bd_pair)


def model_forward(params, x, att, inputs, num_layers, output_size):
    B, A, R = att.shape
    att_flat = att.reshape(B * A, R)
    masks = build_masks(B, A)
    outputs, logprobs = [], []
    for i in range(num_layers):
        prev_c = inputs[2 * i]
        prev_h = inputs[2 * i + 1]
        xt = x if i == 0 else x + outputs[-1]
        nc, th, lp_pad = fused_layer(xt, prev_c, prev_h, att_flat, masks,
                                     params["attens"][2 * i], params["attens"][2 * i + 1],
                                     params["cores"][i], params["proj"])
        outputs.append(nc)
        # TODO(synk): training-mode dropout (p > 0) on top_h not implemented; dropout=0 path.
        outputs.append(th)
        logprobs.append(lp_pad[:, :output_size])
    return outputs, logprobs


# --------------------------------------------------------------------------------------
# Deterministic parameter init (mirrors torch.nn.Linear fan-in uniform init).
# --------------------------------------------------------------------------------------
def linear_init(key, fan_in, fan_out):
    k1, k2 = jax.random.split(key)
    bound = 1.0 / math.sqrt(fan_in)
    w = jax.random.uniform(k1, (fan_in, fan_out), jnp.float32, -bound, bound)
    b = jax.random.uniform(k2, (fan_out,), jnp.float32, -bound, bound)
    return w, b


def init_params(key, input_size, rnn_size, att_size, output_size, num_layers, num_parallels):
    R, A, I, O = rnn_size, att_size, input_size, output_size
    n_keys = num_layers * num_parallels * 3 + num_layers * 2 * 3 + 1
    keys = jax.random.split(key, n_keys)
    kidx = 0
    params = {"cores": [], "cores_ref": [], "attens": []}
    for _ in range(num_layers):
        raw = []
        for _ in range(num_parallels):
            wi, bi = linear_init(keys[kidx], I, 4 * R); kidx += 1
            wh, bh = linear_init(keys[kidx], R, 4 * R); kidx += 1
            wa, ba = linear_init(keys[kidx], R, 4 * R); kidx += 1
            raw.append((wi, bi, wh, bh, wa, ba))
        params["cores_ref"].append(raw)
        params["cores"].append({
            "wi": jnp.concatenate([r[0] for r in raw], axis=1),                     # (I, P*4R)
            "wh": jnp.concatenate([r[2] for r in raw], axis=1),                     # (R, P*4R)
            "wa": jnp.concatenate([r[4] for r in raw], axis=1),                     # (R, P*4R)
            "b": jnp.concatenate([(r[1] + r[3] + r[5])[None, :] for r in raw], axis=1),
        })
    for _ in range(num_layers * 2):
        wa, ba = linear_init(keys[kidx], R, A); kidx += 1
        wh, bh = linear_init(keys[kidx], R, A); kidx += 1
        wd, bd = linear_init(keys[kidx], A, 1); kidx += 1
        params["attens"].append({
            "wa": wa, "ba": ba[None, :],
            "wh": wh, "bh": bh[None, :],
            "wd_row": wd.T,            # (1, A)
            "bd": bd,                  # (1,)  -> SMEM scalar
        })
    wp, bp = linear_init(keys[kidx], R, O)
    o_pad = max(128, ((O + 127) // 128) * 128)
    wp_pad = jnp.zeros((R, o_pad), jnp.float32).at[:, :O].set(wp)
    bp_pad = jnp.full((1, o_pad), -1e9, jnp.float32).at[0, :O].set(bp)
    params["proj"] = {"w": wp_pad, "b": bp_pad}
    params["proj_ref"] = {"w": wp, "b": bp}
    return params


# --------------------------------------------------------------------------------------
# Pure-JAX references (correctness check only).
# --------------------------------------------------------------------------------------
def ref_soft_att(att, prev_h, p):
    B, A, R = att.shape
    v = (att.reshape(B * A, R) @ p["wa"] + p["ba"]).reshape(B, A, A)
    hh = prev_h @ p["wh"] + p["bh"]                       # (B, A)
    d = jnp.tanh(v + hh[:, :, None])
    scores = jnp.einsum("bij,j->bi", d, p["wd_row"][0]) + p["bd"][0]
    w = jax.nn.softmax(scores, axis=-1)
    return jnp.einsum("bir,bi->br", att, w)


def ref_forward(params, x, att, inputs, num_layers):
    R = inputs[0].shape[-1]
    outputs, logprobs = [], []
    for i in range(num_layers):
        prev_c = inputs[2 * i]
        prev_h = inputs[2 * i + 1]
        xt = x if i == 0 else x + outputs[-1]
        par = ref_soft_att(att, prev_h, params["attens"][2 * i])
        ncs, nhs = [], []
        for (wi, bi, wh, bh, wa, ba) in params["cores_ref"][i]:
            s = xt @ wi + bi + prev_h @ wh + bh + par @ wa + ba
            ig = jax.nn.sigmoid(s[:, :R])
            fg = jax.nn.sigmoid(s[:, R:2 * R])
            og = jax.nn.sigmoid(s[:, 2 * R:3 * R])
            it = jnp.tanh(s[:, 3 * R:])
            nc = fg * prev_c + ig * it
            ncs.append(nc)
            nhs.append(og * jnp.tanh(nc))
        next_c = sum(ncs) / len(ncs)
        next_h = sum(nhs) / len(nhs)
        ar = ref_soft_att(att, next_h, params["attens"][2 * i + 1])
        top_h = ar + next_h
        outputs.append(next_c)
        outputs.append(top_h)
        logits = top_h @ params["proj_ref"]["w"] + params["proj_ref"]["b"]
        logprobs.append(jax.nn.log_softmax(logits, axis=-1))
    return outputs, logprobs


# --------------------------------------------------------------------------------------
if __name__ == "__main__":
    B = 4
    input_size = 32    # must equal rnn_size for the x + outputs[-1] residual (layer > 0)
    rnn_size = 32
    att_size = 16
    output_size = 10
    num_layers = 2
    num_parallels = 2

    key = jax.random.PRNGKey(0)
    keys = jax.random.split(key, 3 + 2 * num_layers)
    kp, kx, ka = keys[0], keys[1], keys[2]
    kin = keys[3:]

    params = init_params(kp, input_size, rnn_size, att_size, output_size,
                         num_layers, num_parallels)
    x = jax.random.normal(kx, (B, input_size), jnp.float32)
    att = jax.random.normal(ka, (B, att_size, rnn_size), jnp.float32)
    inputs = [jax.random.normal(kin[t], (B, rnn_size), jnp.float32)
              for t in range(2 * num_layers)]

    # --- the spec module on its own: lstm_soft_att(att, prev_h) ---
    att_out = lstm_soft_att(att, inputs[1], params["attens"][0])
    jax.block_until_ready(att_out)
    att_ref = ref_soft_att(att, inputs[1], params["attens"][0])
    assert att_out.shape == (B, rnn_size)
    assert jnp.allclose(att_out, att_ref, atol=2e-3, rtol=2e-3), \
        float(jnp.max(jnp.abs(att_out - att_ref)))

    # --- fused per-layer stack forward (one pallas_call per layer) ---
    forward = jax.jit(model_forward, static_argnums=(4, 5))
    outputs, logprobs = forward(params, x, att, inputs, num_layers, output_size)
    jax.block_until_ready(outputs + logprobs)

    ref_outputs, ref_logprobs = ref_forward(params, x, att, inputs, num_layers)
    for got, ref in zip(outputs + logprobs, ref_outputs + ref_logprobs):
        assert got.shape == ref.shape
        assert jnp.allclose(got, ref, atol=2e-3, rtol=2e-3), \
            float(jnp.max(jnp.abs(got - ref)))

    print("KERNEL_OK")
</pallas_src>

<mosaic_0001>
module attributes {stable_mosaic.version = 11 : i64} {
  func.func @_soft_att_kernel(%arg0: memref<64x32xf32, #tpu.memory_space<vmem>>, %arg1: memref<4x32xf32, #tpu.memory_space<vmem>>, %arg2: memref<64x4xf32, #tpu.memory_space<vmem>>, %arg3: memref<4x64xf32, #tpu.memory_space<vmem>>, %arg4: memref<64x16xf32, #tpu.memory_space<vmem>>, %arg5: memref<32x16xf32, #tpu.memory_space<vmem>>, %arg6: memref<1x16xf32, #tpu.memory_space<vmem>>, %arg7: memref<32x16xf32, #tpu.memory_space<vmem>>, %arg8: memref<1x16xf32, #tpu.memory_space<vmem>>, %arg9: memref<1x16xf32, #tpu.memory_space<vmem>>, %arg10: memref<1xf32, #tpu.memory_space<smem>>, %arg11: memref<4x32xf32, #tpu.memory_space<vmem>>) attributes {dimension_semantics = [], scalar_prefetch = 0 : i64, scratch_operands = 0 : i64, tpu.core_type = #tpu.core_type<tc>} {
    %c0 = arith.constant 0 : index
    %c0_0 = arith.constant 0 : index
    %0 = vector.load %arg0[%c0, %c0_0] : memref<64x32xf32, #tpu.memory_space<vmem>>, vector<64x32xf32>
    %c0_1 = arith.constant 0 : index
    %c0_2 = arith.constant 0 : index
    %1 = vector.load %arg1[%c0_1, %c0_2] : memref<4x32xf32, #tpu.memory_space<vmem>>, vector<4x32xf32>
    %c0_3 = arith.constant 0 : index
    %c0_4 = arith.constant 0 : index
    %2 = vector.load %arg5[%c0_3, %c0_4] : memref<32x16xf32, #tpu.memory_space<vmem>>, vector<32x16xf32>
    %c0_5 = arith.constant 0 : index
    %c0_6 = arith.constant 0 : index
    %3 = vector.load %arg6[%c0_5, %c0_6] : memref<1x16xf32, #tpu.memory_space<vmem>>, vector<1x16xf32>
    %c0_7 = arith.constant 0 : index
    %c0_8 = arith.constant 0 : index
    %4 = vector.load %arg7[%c0_7, %c0_8] : memref<32x16xf32, #tpu.memory_space<vmem>>, vector<32x16xf32>
    %c0_9 = arith.constant 0 : index
    %c0_10 = arith.constant 0 : index
    %5 = vector.load %arg8[%c0_9, %c0_10] : memref<1x16xf32, #tpu.memory_space<vmem>>, vector<1x16xf32>
    %c0_11 = arith.constant 0 : index
    %c0_12 = arith.constant 0 : index
    %6 = vector.load %arg9[%c0_11, %c0_12] : memref<1x16xf32, #tpu.memory_space<vmem>>, vector<1x16xf32>
    %c0_13 = arith.constant 0 : index
    %7 = memref.load %arg10[%c0_13] : memref<1xf32, #tpu.memory_space<smem>>
    %c0_14 = arith.constant 0 : index
    %c0_15 = arith.constant 0 : index
    %8 = vector.load %arg2[%c0_14, %c0_15] : memref<64x4xf32, #tpu.memory_space<vmem>>, vector<64x4xf32>
    %c0_16 = arith.constant 0 : index
    %c0_17 = arith.constant 0 : index
    %9 = vector.load %arg3[%c0_16, %c0_17] : memref<4x64xf32, #tpu.memory_space<vmem>>, vector<4x64xf32>
    %c0_18 = arith.constant 0 : index
    %c0_19 = arith.constant 0 : index
    %10 = vector.load %arg4[%c0_18, %c0_19] : memref<64x16xf32, #tpu.memory_space<vmem>>, vector<64x16xf32>
    %cst = arith.constant dense<0.000000e+00> : vector<64x16xf32>
    %11 = tpu.matmul %0, %2, %cst {dimension_numbers = #tpu.dot_dimension_numbers<[1], [0], [0], [1], [0, 0, 1, 1], [], []>} : vector<64x32xf32>, vector<32x16xf32>, vector<64x16xf32> -> vector<64x16xf32>
    %12 = vector.broadcast %3 : vector<1x16xf32> to vector<64x16xf32>
    %13 = arith.addf %11, %12 : vector<64x16xf32>
    %cst_20 = arith.constant dense<0.000000e+00> : vector<4x16xf32>
    %14 = tpu.matmul %1, %4, %cst_20 {dimension_numbers = #tpu.dot_dimension_numbers<[1], [0], [0], [1], [0, 0, 1, 1], [], []>} : vector<4x32xf32>, vector<32x16xf32>, vector<4x16xf32> -> vector<4x16xf32>
    %15 = vector.broadcast %5 : vector<1x16xf32> to vector<4x16xf32>
    %16 = arith.addf %14, %15 : vector<4x16xf32>
    %cst_21 = arith.constant dense<0.000000e+00> : vector<64x16xf32>
    %17 = tpu.matmul %8, %16, %cst_21 {dimension_numbers = #tpu.dot_dimension_numbers<[1], [0], [0], [1], [0, 0, 1, 1], [], []>} : vector<64x4xf32>, vector<4x16xf32>, vector<64x16xf32> -> vector<64x16xf32>
    %18 = arith.mulf %17, %10 : vector<64x16xf32>
    %cst_22 = arith.constant dense<0.000000e+00> : vector<64xf32>
    %19 = vector.multi_reduction <add>, %18, %cst_22 [1] : vector<64x16xf32> to vector<64xf32>
    %20 = vector.shape_cast %19 : vector<64xf32> to vector<64x1xf32>
    %21 = vector.broadcast %20 : vector<64x1xf32> to vector<64x16xf32>
    %22 = arith.addf %13, %21 : vector<64x16xf32>
    %23 = math.tanh %22 : vector<64x16xf32>
    %24 = vector.broadcast %6 : vector<1x16xf32> to vector<64x16xf32>
    %25 = arith.mulf %23, %24 : vector<64x16xf32>
    %cst_23 = arith.constant dense<0.000000e+00> : vector<64xf32>
    %26 = vector.multi_reduction <add>, %25, %cst_23 [1] : vector<64x16xf32> to vector<64xf32>
    %27 = vector.shape_cast %26 : vector<64xf32> to vector<64x1xf32>
    %28 = vector.broadcast %7 : f32 to vector<64x1xf32>
    %29 = arith.addf %27, %28 : vector<64x1xf32>
    %30 = vector.shape_cast %29 : vector<64x1xf32> to vector<1x64x1xf32>
    %cst_24 = arith.constant dense<0xFF800000> : vector<1xf32>
    %31 = vector.multi_reduction <maximumf>, %30, %cst_24 [1, 2] : vector<1x64x1xf32> to vector<1xf32>
    %32 = vector.shape_cast %31 : vector<1xf32> to vector<1x1x1xf32>
    %33 = vector.extract %32[0, 0, 0] : f32 from vector<1x1x1xf32>
    %34 = vector.broadcast %33 : f32 to vector<64x1xf32>
    %35 = arith.subf %29, %34 : vector<64x1xf32>
    %36 = math.exp %35 : vector<64x1xf32>
    %cst_25 = arith.constant dense<0.000000e+00> : vector<4x1xf32>
    %37 = tpu.matmul %9, %36, %cst_25 {dimension_numbers = #tpu.dot_dimension_numbers<[1], [0], [0], [1], [0, 0, 1, 1], [], []>} : vector<4x64xf32>, vector<64x1xf32>, vector<4x1xf32> -> vector<4x1xf32>
    %cst_26 = arith.constant dense<0.000000e+00> : vector<64x1xf32>
    %38 = tpu.matmul %8, %37, %cst_26 {dimension_numbers = #tpu.dot_dimension_numbers<[1], [0], [0], [1], [0, 0, 1, 1], [], []>} : vector<64x4xf32>, vector<4x1xf32>, vector<64x1xf32> -> vector<64x1xf32>
    %39 = arith.divf %36, %38 : vector<64x1xf32>
    %40 = vector.broadcast %39 : vector<64x1xf32> to vector<64x32xf32>
    %41 = arith.mulf %0, %40 : vector<64x32xf32>
    %cst_27 = arith.constant dense<0.000000e+00> : vector<4x32xf32>
    %42 = tpu.matmul %9, %41, %cst_27 {dimension_numbers = #tpu.dot_dimension_numbers<[1], [0], [0], [1], [0, 0, 1, 1], [], []>} : vector<4x64xf32>, vector<64x32xf32>, vector<4x32xf32> -> vector<4x32xf32>
    %c0_28 = arith.constant 0 : index
    %c0_29 = arith.constant 0 : index
    %43 = vector.load %arg11[%c0_28, %c0_29] : memref<4x32xf32, #tpu.memory_space<vmem>>, vector<4x32xf32>
    tpu.vector_store %arg11[%c0_28, %c0_29], %42 {strides = array<i32>} : memref<4x32xf32, #tpu.memory_space<vmem>>, vector<4x32xf32>,
    return
  }
}

</mosaic_0001>

<llo_original>
// kernel: tpu_custom_call.1
$region0: #{tpu_custom_call.1}
  #allocation0 [shape = 'u32[]', space=smem, size = 0x4, offset = 0x4, fixed_abs, tag = 'smem constant byte address 0x4 - core index']
  #allocation1 [shape = 'u32[72,128]{1,0:T(1,128)}', space=vmem, size = 0x9000, scoped, tag = 'internal scratch']
  #allocation2 [shape = 'f32[1]{0:T(128)S(6)}', space=smem, size = 0x200, scoped, tag = 'scoped memory for tpu_custom_call.1']
  %s0 = inlined_call_operand.vmem [shape: f32[64,32], index: 0, kind: input, shape index: {}]
  %s1 = inlined_call_operand.vmem [shape: f32[4,32], index: 1, kind: input, shape index: {}]
  %s2 = inlined_call_operand.vmem [shape: f32[64,4], index: 2, kind: input, shape index: {}]
  %s3 = inlined_call_operand.vmem [shape: f32[4,64], index: 3, kind: input, shape index: {}]
  %s4 = inlined_call_operand.vmem [shape: f32[64,16], index: 4, kind: input, shape index: {}]
  %s5 = inlined_call_operand.vmem [shape: f32[32,16], index: 5, kind: input, shape index: {}]
  %s6 = inlined_call_operand.vmem [shape: f32[1,16], index: 6, kind: input, shape index: {}]
  %s7 = inlined_call_operand.vmem [shape: f32[32,16], index: 7, kind: input, shape index: {}]
  %s8 = inlined_call_operand.vmem [shape: f32[1,16], index: 8, kind: input, shape index: {}]
  %s9 = inlined_call_operand.vmem [shape: f32[1,16], index: 9, kind: input, shape index: {}]
  %s10 = inlined_call_operand.<no memory space> [shape: f32[1], index: 10, kind: input, shape index: {}]
  %s11 = inlined_call_operand.hbm [shape: f32[4,32], index: 11, kind: output, shape index: {}]
  %s12 = sld [smem:[#allocation0]]
  $region54: #{tpu_custom_call.1} parent=0
    _
  %s14 = ssub.s32 1, %s12
  %s15 = scalar_select 0, %s14, %s12
  %16 = sst [smem:[#allocation2]] %s10
  $region1: #{tpu_custom_call.1} parent=0
    #allocation3 [shape = 'u8[2048]{0}', space=vmem, size = 0x800, scoped, tag = 'output window, operand 0, single buffered']
    #allocation4 [shape = 's32[1]{0}', space=sflag, size = 0x4, scoped, tag = 'scoped memory for tpu_custom_call.1']
    %17 = vsyncpa [#allocation4], 0
    // Predicated region
    $region2: #{tpu_custom_call.1} parent=1 // pred_check
      _
    $region3: #{tpu_custom_call.1} parent=1 // pred_check_branch
      %19 = sbr.rel (0) target = $region5
    $region4: #{tpu_custom_call.1} parent=1 // pred_region
      _
    $region5: #{tpu_custom_call.1} parent=1 // pred_fallthru
      _
    // Predicated region
    $region6: #{tpu_custom_call.1} parent=1 // pred_check
      _
    $region7: #{tpu_custom_call.1} parent=1 // pred_check_branch
      %21 = sbr.rel (0) target = $region9
    $region8: #{tpu_custom_call.1} parent=1 // pred_region
      _
    $region9: #{tpu_custom_call.1} parent=1 // pred_fallthru
      _
    // Predicated region
    $region10: #{tpu_custom_call.1} parent=1 // pred_check
      _
    $region11: #{tpu_custom_call.1} parent=1 // pred_check_branch
      %23 = sbr.rel (0) target = $region13
    $region12: #{tpu_custom_call.1} parent=1 // pred_region
      _
    $region13: #{tpu_custom_call.1} parent=1 // pred_fallthru
      _
    // Predicated region
    $region14: #{tpu_custom_call.1} parent=1 // pred_check
      _
    $region15: #{tpu_custom_call.1} parent=1 // pred_check_branch
      %25 = sbr.rel (0) target = $region17
    $region16: #{tpu_custom_call.1} parent=1 // pred_region
      _
    $region17: #{tpu_custom_call.1} parent=1 // pred_fallthru
      _
    // Predicated region
    $region18: #{tpu_custom_call.1} parent=1 // pred_check
      _
    $region19: #{tpu_custom_call.1} parent=1 // pred_check_branch
      %27 = sbr.rel (0) target = $region21
    $region20: #{tpu_custom_call.1} parent=1 // pred_region
      _
    $region21: #{tpu_custom_call.1} parent=1 // pred_fallthru
      _
    // Predicated region
    $region22: #{tpu_custom_call.1} parent=1 // pred_check
      _
    $region23: #{tpu_custom_call.1} parent=1 // pred_check_branch
      %29 = sbr.rel (0) target = $region25
    $region24: #{tpu_custom_call.1} parent=1 // pred_region
      _
    $region25: #{tpu_custom_call.1} parent=1 // pred_fallthru
      _
    // Predicated region
    $region26: #{tpu_custom_call.1} parent=1 // pred_check
      _
    $region27: #{tpu_custom_call.1} parent=1 // pred_check_branch
      %31 = sbr.rel (0) target = $region29
    $region28: #{tpu_custom_call.1} parent=1 // pred_region
      _
    $region29: #{tpu_custom_call.1} parent=1 // pred_fallthru
      _
    // Predicated region
    $region30: #{tpu_custom_call.1} parent=1 // pred_check
      _
    $region31: #{tpu_custom_call.1} parent=1 // pred_check_branch
      %33 = sbr.rel (0) target = $region33
    $region32: #{tpu_custom_call.1} parent=1 // pred_region
      _
    $region33: #{tpu_custom_call.1} parent=1 // pred_fallthru
      _
    // Predicated region
    $region34: #{tpu_custom_call.1} parent=1 // pred_check
      _
    $region35: #{tpu_custom_call.1} parent=1 // pred_check_branch
      %35 = sbr.rel (0) target = $region37
    $region36: #{tpu_custom_call.1} parent=1 // pred_region
      _
    $region37: #{tpu_custom_call.1} parent=1 // pred_fallthru
      _
    // Predicated region
    $region38: #{tpu_custom_call.1} parent=1 // pred_check
      _
    $region39: #{tpu_custom_call.1} parent=1 // pred_check_branch
      %37 = sbr.rel (0) target = $region41
    $region40: #{tpu_custom_call.1} parent=1 // pred_region
      _
    $region41: #{tpu_custom_call.1} parent=1 // pred_fallthru
      _
    // Predicated region
    $region42: #{tpu_custom_call.1} parent=1 // pred_check
      _
    $region43: #{tpu_custom_call.1} parent=1 // pred_check_branch
      %39 = sbr.rel (0) target = $region45
    $region44: #{tpu_custom_call.1} parent=1 // pred_region
      _
    $region45: #{tpu_custom_call.1} parent=1 // pred_fallthru
      _
    %v40 = vld [vmem:[%s0] sm:$0xff]
    %v41 = vld [vmem:[%s0 + $0x8] sm:$0xff]
    %v42 = vld [vmem:[%s0 + $0x10] sm:$0xff]
    %v43 = vld [vmem:[%s0 + $0x18] sm:$0xff]
    %v44 = vld [vmem:[%s0 + $0x20] sm:$0xff]
    %v45 = vld [vmem:[%s0 + $0x28] sm:$0xff]
    %v46 = vld [vmem:[%s0 + $0x30] sm:$0xff]
    %v47 = vld [vmem:[%s0 + $0x38] sm:$0xff]
    %v48 = vld [vmem:[%s1] sm:$0xf]
    %v49 = vld [vmem:[%s5] sm:$0xff]
    %v50 = vld [vmem:[%s5 + $0x8] sm:$0xff]
    %v51 = vld [vmem:[%s5 + $0x10] sm:$0xff]
    %v52 = vld [vmem:[%s5 + $0x18] sm:$0xff]
    %v53 = vld [vmem:[%s6] sm:$0x1]
    %v54 = vld [vmem:[%s7] sm:$0xff]
    %v55 = vld [vmem:[%s7 + $0x8] sm:$0xff]
    %v56 = vld [vmem:[%s7 + $0x10] sm:$0xff]
    %v57 = vld [vmem:[%s7 + $0x18] sm:$0xff]
    %v58 = vld [vmem:[%s8] sm:$0x1]
    %v59 = vld [vmem:[%s9] sm:$0x1]
    %s60 = sld [smem:[#allocation2]]
    %v61 = vld [vmem:[%s2] sm:$0xff]
    %v62 = vld [vmem:[%s2 + $0x8] sm:$0xff]
    %v63 = vld [vmem:[%s2 + $0x10] sm:$0xff]
    %v64 = vld [vmem:[%s2 + $0x18] sm:$0xff]
    %v65 = vld [vmem:[%s2 + $0x20] sm:$0xff]
    %v66 = vld [vmem:[%s2 + $0x28] sm:$0xff]
    %v67 = vld [vmem:[%s2 + $0x30] sm:$0xff]
    %v68 = vld [vmem:[%s2 + $0x38] sm:$0xff]
    %v69 = vld [vmem:[%s3] sm:$0xf]
    %v70 = vld [vmem:[%s4] sm:$0xff]
    %v71 = vld [vmem:[%s4 + $0x8] sm:$0xff]
    %v72 = vld [vmem:[%s4 + $0x10] sm:$0xff]
    %v73 = vld [vmem:[%s4 + $0x18] sm:$0xff]
    %v74 = vld [vmem:[%s4 + $0x20] sm:$0xff]
    %v75 = vld [vmem:[%s4 + $0x28] sm:$0xff]
    %v76 = vld [vmem:[%s4 + $0x30] sm:$0xff]
    %v77 = vld [vmem:[%s4 + $0x38] sm:$0xff]
    %v79 = vperm.slane %v53, 0
    %vm81 = vcmask 261120
    %v83 = vsel %vm81, %v40, 0
    %v86 = vsel %vm81, %v41, 0
    %v89 = vsel %vm81, %v42, 0
    %v92 = vsel %vm81, %v43, 0
    %v95 = vsel %vm81, %v44, 0
    %v98 = vsel %vm81, %v45, 0
    %v101 = vsel %vm81, %v46, 0
    %v104 = vsel %vm81, %v47, 0
    %106 = vmatpush.msra.mxu0 0.0
    %107 = vmatpush.msra.mxu0 0.0
    %108 = vmatpush.msra.mxu0 0.0
    %109 = vmatpush.msra.mxu0 0.0
    %110 = vmatpush.msra.mxu0 0.0
    %111 = vmatpush.msra.mxu0 0.0
    %112 = vmatpush.msra.mxu0 0.0
    %113 = vmatpush.msra.mxu0 0.0
    %114 = vmatpush.msra.mxu0 0.0
    %115 = vmatpush.msra.mxu0 0.0
    %116 = vmatpush.msra.mxu0 0.0
    %117 = vmatpush.msra.mxu0 0.0
    %118 = vmatpush.msra.mxu0 %v52
    %119 = vmatpush.msra.mxu0 %v51
    %120 = vmatpush.msra.mxu0 %v50
    %121 = vmatpush.msra.mxu0 %v49
    %122 = vmatmul.f32.gmra.mxu0 %v83
    %v123 = vpop.f32.mrf.mxu0
    %v124 = vadd.f32 %v79, %v123
    %125 = vmatmul.f32.gmra.mxu0 %v86
    %v126 = vpop.f32.mrf.mxu0
    %v127 = vadd.f32 %v79, %v126
    %128 = vmatmul.f32.gmra.mxu0 %v89
    %v129 = vpop.f32.mrf.mxu0
    %v130 = vadd.f32 %v79, %v129
    %131 = vmatmul.f32.gmra.mxu0 %v92
    %v132 = vpop.f32.mrf.mxu0
    %v133 = vadd.f32 %v79, %v132
    %134 = vmatmul.f32.gmra.mxu0 %v95
    %v135 = vpop.f32.mrf.mxu0
    %v136 = vadd.f32 %v79, %v135
    %137 = vmatmul.f32.gmra.mxu0 %v98
    %v138 = vpop.f32.mrf.mxu0
    %v139 = vadd.f32 %v79, %v138
    %140 = vmatmul.f32.gmra.mxu0 %v101
    %v141 = vpop.f32.mrf.mxu0
    %v142 = vadd.f32 %v79, %v141
    %143 = vmatmul.f32.gmra.mxu0 %v104
    %v144 = vpop.f32.mrf.mxu0
    %v145 = vadd.f32 %v79, %v144
    %146 = vdwg.mxu0
    %v148 = vperm.slane %v58, 0
    %v151 = vsel %vm81, %v48, 0
    %153 = vmatpush.msra.mxu0 0.0
    %154 = vmatpush.msra.mxu0 0.0
    %155 = vmatpush.msra.mxu0 0.0
    %156 = vmatpush.msra.mxu0 0.0
    %157 = vmatpush.msra.mxu0 0.0
    %158 = vmatpush.msra.mxu0 0.0
    %159 = vmatpush.msra.mxu0 0.0
    %160 = vmatpush.msra.mxu0 0.0
    %161 = vmatpush.msra.mxu0 0.0
    %162 = vmatpush.msra.mxu0 0.0
    %163 = vmatpush.msra.mxu0 0.0
    %164 = vmatpush.msra.mxu0 0.0
    %165 = vmatpush.msra.mxu0 %v57
    %166 = vmatpush.msra.mxu0 %v56
    %167 = vmatpush.msra.mxu0 %v55
    %168 = vmatpush.msra.mxu0 %v54
    %169 = vmatmul.f32.gmra.mxu0 %v151
    %v170 = vpop.f32.mrf.mxu0
    %v171 = vadd.f32 %v148, %v170
    %172 = vdwg.mxu0
    %vm173 = vcmask 31744
    %v175 = vsel %vm173, %v61, 0
    %v178 = vsel %vm173, %v62, 0
    %v181 = vsel %vm173, %v63, 0
    %v184 = vsel %vm173, %v64, 0
    %v187 = vsel %vm173, %v65, 0
    %v190 = vsel %vm173, %v66, 0
    %v193 = vsel %vm173, %v67, 0
    %v196 = vsel %vm173, %v68, 0
    %vm198 = vcmask 1043456
    %v200 = vsel %vm198, %v171, 0
    %202 = vmatpush.msra.mxu0 0.0
    %203 = vmatpush.msra.mxu0 0.0
    %204 = vmatpush.msra.mxu0 0.0
    %205 = vmatpush.msra.mxu0 0.0
    %206 = vmatpush.msra.mxu0 0.0
    %207 = vmatpush.msra.mxu0 0.0
    %208 = vmatpush.msra.mxu0 0.0
    %209 = vmatpush.msra.mxu0 0.0
    %210 = vmatpush.msra.mxu0 0.0
    %211 = vmatpush.msra.mxu0 0.0
    %212 = vmatpush.msra.mxu0 0.0
    %213 = vmatpush.msra.mxu0 0.0
    %214 = vmatpush.msra.mxu0 0.0
    %215 = vmatpush.msra.mxu0 0.0
    %216 = vmatpush.msra.mxu0 0.0
    %217 = vmatpush.msra.mxu0 %v200
    %218 = vmatmul.f32.gmra.mxu0 %v175
    %v219 = vpop.f32.mrf.mxu0
    %v220 = vadd.f32 0.0, %v219
    %221 = vmatmul.f32.gmra.mxu0 %v178
    %v222 = vpop.f32.mrf.mxu0
    %v223 = vadd.f32 0.0, %v222
    %224 = vmatmul.f32.gmra.mxu0 %v181
    %v225 = vpop.f32.mrf.mxu0
    %v226 = vadd.f32 0.0, %v225
    %227 = vmatmul.f32.gmra.mxu0 %v184
    %v228 = vpop.f32.mrf.mxu0
    %v229 = vadd.f32 0.0, %v228
    %230 = vmatmul.f32.gmra.mxu0 %v187
    %v231 = vpop.f32.mrf.mxu0
    %v232 = vadd.f32 0.0, %v231
    %233 = vmatmul.f32.gmra.mxu0 %v190
    %v234 = vpop.f32.mrf.mxu0
    %v235 = vadd.f32 0.0, %v234
    %236 = vmatmul.f32.gmra.mxu0 %v193
    %v237 = vpop.f32.mrf.mxu0
    %v238 = vadd.f32 0.0, %v237
    %239 = vmatmul.f32.gmra.mxu0 %v196
    %v240 = vpop.f32.mrf.mxu0
    %v241 = vadd.f32 0.0, %v240
    %242 = vdwg.mxu0
    %v243 = vmul.f32 %v220, %v70
    %v244 = vmul.f32 %v223, %v71
    %v245 = vmul.f32 %v226, %v72
    %v246 = vmul.f32 %v229, %v73
    %v247 = vmul.f32 %v232, %v74
    %v248 = vmul.f32 %v235, %v75
    %v249 = vmul.f32 %v238, %v76
    %v250 = vmul.f32 %v241, %v77
    %vm251 = vcmask 130048
    %v252 = vsel %vm251, %v243, 0.0
    %253 = vadd.xlane.f32.xlu0 %v252
    %v254 = vpop.xlane.xlu0 %253
    %v255 = vsel %vm251, %v244, 0.0
    %256 = vadd.xlane.f32.xlu0 %v255
    %v257 = vpop.xlane.xlu0 %256
    %v258 = vsel %vm251, %v245, 0.0
    %259 = vadd.xlane.f32.xlu0 %v258
    %v260 = vpop.xlane.xlu0 %259
    %v261 = vsel %vm251, %v246, 0.0
    %262 = vadd.xlane.f32.xlu0 %v261
    %v263 = vpop.xlane.xlu0 %262
    %v264 = vsel %vm251, %v247, 0.0
    %265 = vadd.xlane.f32.xlu0 %v264
    %v266 = vpop.xlane.xlu0 %265
    %v267 = vsel %vm251, %v248, 0.0
    %268 = vadd.xlane.f32.xlu0 %v267
    %v269 = vpop.xlane.xlu0 %268
    %v270 = vsel %vm251, %v249, 0.0
    %271 = vadd.xlane.f32.xlu0 %v270
    %v272 = vpop.xlane.xlu0 %271
    %v273 = vsel %vm251, %v250, 0.0
    %274 = vadd.xlane.f32.xlu0 %v273
    %v275 = vpop.xlane.xlu0 %274
    %v276 = vadd.f32 %v124, %v254
    %v277 = vadd.f32 %v127, %v257
    %v278 = vadd.f32 %v130, %v260
    %v279 = vadd.f32 %v133, %v263
    %v280 = vadd.f32 %v136, %v266
    %v281 = vadd.f32 %v139, %v269
    %v282 = vadd.f32 %v142, %v272
    %v283 = vadd.f32 %v145, %v275
    %v284 = vtanh.pop %v276
    %v285 = vtanh.pop %v277
    %v286 = vtanh.pop %v278
    %v287 = vtanh.pop %v279
    %v288 = vtanh.pop %v280
    %v289 = vtanh.pop %v281
    %v290 = vtanh.pop %v282
    %v291 = vtanh.pop %v283
    %v293 = vperm.slane %v59, 0
    %v295 = vmul.f32 %v284, %v293
    %v296 = vmul.f32 %v285, %v293
    %v297 = vmul.f32 %v286, %v293
    %v298 = vmul.f32 %v287, %v293
    %v299 = vmul.f32 %v288, %v293
    %v300 = vmul.f32 %v289, %v293
    %v301 = vmul.f32 %v290, %v293
    %v302 = vmul.f32 %v291, %v293
    %v303 = vsel %vm251, %v295, 0.0
    %304 = vadd.xlane.f32.xlu0 %v303
    %v305 = vpop.xlane.xlu0 %304
    %v306 = vsel %vm251, %v296, 0.0
    %307 = vadd.xlane.f32.xlu0 %v306
    %v308 = vpop.xlane.xlu0 %307
    %v309 = vsel %vm251, %v297, 0.0
    %310 = vadd.xlane.f32.xlu0 %v309
    %v311 = vpop.xlane.xlu0 %310
    %v312 = vsel %vm251, %v298, 0.0
    %313 = vadd.xlane.f32.xlu0 %v312
    %v314 = vpop.xlane.xlu0 %313
    %v315 = vsel %vm251, %v299, 0.0
    %316 = vadd.xlane.f32.xlu0 %v315
    %v317 = vpop.xlane.xlu0 %316
    %v318 = vsel %vm251, %v300, 0.0
    %319 = vadd.xlane.f32.xlu0 %v318
    %v320 = vpop.xlane.xlu0 %319
    %v321 = vsel %vm251, %v301, 0.0
    %322 = vadd.xlane.f32.xlu0 %v321
    %v323 = vpop.xlane.xlu0 %322
    %v324 = vsel %vm251, %v302, 0.0
    %325 = vadd.xlane.f32.xlu0 %v324
    %v326 = vpop.xlane.xlu0 %325
    %v327 = vstv %s60
    %v328 = vadd.f32 %v305, %v327
    %v329 = vadd.f32 %v308, %v327
    %v330 = vadd.f32 %v311, %v327
    %v331 = vadd.f32 %v314, %v327
    %v332 = vadd.f32 %v317, %v327
    %v333 = vadd.f32 %v320, %v327
    %v334 = vadd.f32 %v323, %v327
    %v335 = vadd.f32 %v326, %v327
    %v336 = vmax.f32 %v328, %v332
    %v337 = vmax.f32 %v329, %v333
    %v338 = vmax.f32 %v330, %v334
    %v339 = vmax.f32 %v331, %v335
    %v340 = vmax.f32 %v336, %v337
    %v341 = vmax.f32 %v338, %v339
    %v342 = vmax.f32 %v340, %v341
    %v343 = vrot.slane %v342, 4
    %v344 = vmax.f32 %v342, %v343
    %v345 = vrot.slane %v344, 2
    %v346 = vmax.f32 %v344, %v345
    %v347 = vrot.slane %v346, 1
    %v348 = vmax.f32 %v346, %v347
    %s349 = vtos %v348
    %v350 = vstv %s349
    %v351 = vsub.f32 %v328, %v350
    %v352 = vsub.f32 %v329, %v350
    %v353 = vsub.f32 %v330, %v350
    %v354 = vsub.f32 %v331, %v350
    %v355 = vsub.f32 %v332, %v350
    %v356 = vsub.f32 %v333, %v350
    %v357 = vsub.f32 %v334, %v350
    %v358 = vsub.f32 %v335, %v350
    %v359 = vmul.f32 %v351, 1.442695
    %v360 = vpow.pop %v359
    %v361 = vmul.f32 %v352, 1.442695
    %v362 = vpow.pop %v361
    %v363 = vmul.f32 %v353, 1.442695
    %v364 = vpow.pop %v363
    %v365 = vmul.f32 %v354, 1.442695
    %v366 = vpow.pop %v365
    %v367 = vmul.f32 %v355, 1.442695
    %v368 = vpow.pop %v367
    %v369 = vmul.f32 %v356, 1.442695
    %v370 = vpow.pop %v369
    %v371 = vmul.f32 %v357, 1.442695
    %v372 = vpow.pop %v371
    %v373 = vmul.f32 %v358, 1.442695
    %v374 = vpow.pop %v373
    %vm375 = vcmask 523264
    %v377 = vsel %vm375, %v69, 0
    %379 = vmatpush.msra.mxu0 0.0
    %380 = vmatpush.msra.mxu0 0.0
    %381 = vmatpush.msra.mxu0 0.0
    %382 = vmatpush.msra.mxu0 0.0
    %383 = vmatpush.msra.mxu0 0.0
    %384 = vmatpush.msra.mxu0 0.0
    %385 = vmatpush.msra.mxu0 0.0
    %386 = vmatpush.msra.mxu0 0.0
    %387 = vmatpush.msra.mxu0 %v374
    %388 = vmatpush.msra.mxu0 %v372
    %389 = vmatpush.msra.mxu0 %v370
    %390 = vmatpush.msra.mxu0 %v368
    %391 = vmatpush.msra.mxu0 %v366
    %392 = vmatpush.msra.mxu0 %v364
    %393 = vmatpush.msra.mxu0 %v362
    %394 = vmatpush.msra.mxu0 %v360
    %395 = vmatmul.f32.gmra.mxu0 %v377
    %v396 = vpop.f32.mrf.mxu0
    %v397 = vadd.f32 0.0, %v396
    %398 = vdwg.mxu0
    %v400 = vsel %vm198, %v397, 0
    %402 = vmatpush.msra.mxu0 0.0
    %403 = vmatpush.msra.mxu0 0.0
    %404 = vmatpush.msra.mxu0 0.0
    %405 = vmatpush.msra.mxu0 0.0
    %406 = vmatpush.msra.mxu0 0.0
    %407 = vmatpush.msra.mxu0 0.0
    %408 = vmatpush.msra.mxu0 0.0
    %409 = vmatpush.msra.mxu0 0.0
    %410 = vmatpush.msra.mxu0 0.0
    %411 = vmatpush.msra.mxu0 0.0
    %412 = vmatpush.msra.mxu0 0.0
    %413 = vmatpush.msra.mxu0 0.0
    %414 = vmatpush.msra.mxu0 0.0
    %415 = vmatpush.msra.mxu0 0.0
    %416 = vmatpush.msra.mxu0 0.0
    %417 = vmatpush.msra.mxu0 %v400
    %418 = vmatmul.f32.gmra.mxu0 %v175
    %v419 = vpop.f32.mrf.mxu0
    %v420 = vadd.f32 0.0, %v419
    %421 = vmatmul.f32.gmra.mxu0 %v178
    %v422 = vpop.f32.mrf.mxu0
    %v423 = vadd.f32 0.0, %v422
    %424 = vmatmul.f32.gmra.mxu0 %v181
    %v425 = vpop.f32.mrf.mxu0
    %v426 = vadd.f32 0.0, %v425
    %427 = vmatmul.f32.gmra.mxu0 %v184
    %v428 = vpop.f32.mrf.mxu0
    %v429 = vadd.f32 0.0, %v428
    %430 = vmatmul.f32.gmra.mxu0 %v187
    %v431 = vpop.f32.mrf.mxu0
    %v432 = vadd.f32 0.0, %v431
    %433 = vmatmul.f32.gmra.mxu0 %v190
    %v434 = vpop.f32.mrf.mxu0
    %v435 = vadd.f32 0.0, %v434
    %436 = vmatmul.f32.gmra.mxu0 %v193
    %v437 = vpop.f32.mrf.mxu0
    %v438 = vadd.f32 0.0, %v437
    %439 = vmatmul.f32.gmra.mxu0 %v196
    %v440 = vpop.f32.mrf.mxu0
    %v441 = vadd.f32 0.0, %v440
    %442 = vdwg.mxu0
    %v443 = vrcp.pop %v420
    %v444 = vmul.f32 %v420, %v443
    %v445 = vsub.f32 1.0, %v444
    %v446 = vmul.f32 %v443, %v445
    %v447 = vadd.f32 %v443, %v446
    %vm448 = vweird.f32 %v420
    %vm449 = vweird.f32 %v443
    %vm450 = vmor %vm448, %vm449
    %v451 = vsel %vm450, %v443, %v447
    %v452 = vand.u32 2147483647, %v420
    %vm453 = vcmp.eq.f32.partialorder %v452, 8.507059e+37
    %v454 = vand.u32 %v420, 2147483648
    %v455 = vor.u32 1.1754944e-38, %v454
    %v456 = vsel %vm453, %v455, %v451
    %v457 = vmul.f32 %v360, %v456
    %v458 = vrcp.pop %v423
    %v459 = vmul.f32 %v423, %v458
    %v460 = vsub.f32 1.0, %v459
    %v461 = vmul.f32 %v458, %v460
    %v462 = vadd.f32 %v458, %v461
    %vm463 = vweird.f32 %v423
    %vm464 = vweird.f32 %v458
    %vm465 = vmor %vm463, %vm464
    %v466 = vsel %vm465, %v458, %v462
    %v467 = vand.u32 2147483647, %v423
    %vm468 = vcmp.eq.f32.partialorder %v467, 8.507059e+37
    %v469 = vand.u32 %v423, 2147483648
    %v470 = vor.u32 1.1754944e-38, %v469
    %v471 = vsel %vm468, %v470, %v466
    %v472 = vmul.f32 %v362, %v471
    %v473 = vrcp.pop %v426
    %v474 = vmul.f32 %v426, %v473
    %v475 = vsub.f32 1.0, %v474
    %v476 = vmul.f32 %v473, %v475
    %v477 = vadd.f32 %v473, %v476
    %vm478 = vweird.f32 %v426
    %vm479 = vweird.f32 %v473
    %vm480 = vmor %vm478, %vm479
    %v481 = vsel %vm480, %v473, %v477
    %v482 = vand.u32 2147483647, %v426
    %vm483 = vcmp.eq.f32.partialorder %v482, 8.507059e+37
    %v484 = vand.u32 %v426, 2147483648
    %v485 = vor.u32 1.1754944e-38, %v484
    %v486 = vsel %vm483, %v485, %v481
    %v487 = vmul.f32 %v364, %v486
    %v488 = vrcp.pop %v429
    %v489 = vmul.f32 %v429, %v488
    %v490 = vsub.f32 1.0, %v489
    %v491 = vmul.f32 %v488, %v490
    %v492 = vadd.f32 %v488, %v491
    %vm493 = vweird.f32 %v429
    %vm494 = vweird.f32 %v488
    %vm495 = vmor %vm493, %vm494
    %v496 = vsel %vm495, %v488, %v492
    %v497 = vand.u32 2147483647, %v429
    %vm498 = vcmp.eq.f32.partialorder %v497, 8.507059e+37
    %v499 = vand.u32 %v429, 2147483648
    %v500 = vor.u32 1.1754944e-38, %v499
    %v501 = vsel %vm498, %v500, %v496
    %v502 = vmul.f32 %v366, %v501
    %v503 = vrcp.pop %v432
    %v504 = vmul.f32 %v432, %v503
    %v505 = vsub.f32 1.0, %v504
    %v506 = vmul.f32 %v503, %v505
    %v507 = vadd.f32 %v503, %v506
    %vm508 = vweird.f32 %v432
    %vm509 = vweird.f32 %v503
    %vm510 = vmor %vm508, %vm509
    %v511 = vsel %vm510, %v503, %v507
    %v512 = vand.u32 2147483647, %v432
    %vm513 = vcmp.eq.f32.partialorder %v512, 8.507059e+37
    %v514 = vand.u32 %v432, 2147483648
    %v515 = vor.u32 1.1754944e-38, %v514
    %v516 = vsel %vm513, %v515, %v511
    %v517 = vmul.f32 %v368, %v516
    %v518 = vrcp.pop %v435
    %v519 = vmul.f32 %v435, %v518
    %v520 = vsub.f32 1.0, %v519
    %v521 = vmul.f32 %v518, %v520
    %v522 = vadd.f32 %v518, %v521
    %vm523 = vweird.f32 %v435
    %vm524 = vweird.f32 %v518
    %vm525 = vmor %vm523, %vm524
    %v526 = vsel %vm525, %v518, %v522
    %v527 = vand.u32 2147483647, %v435
    %vm528 = vcmp.eq.f32.partialorder %v527, 8.507059e+37
    %v529 = vand.u32 %v435, 2147483648
    %v530 = vor.u32 1.1754944e-38, %v529
    %v531 = vsel %vm528, %v530, %v526
    %v532 = vmul.f32 %v370, %v531
    %v533 = vrcp.pop %v438
    %v534 = vmul.f32 %v438, %v533
    %v535 = vsub.f32 1.0, %v534
    %v536 = vmul.f32 %v533, %v535
    %v537 = vadd.f32 %v533, %v536
    %vm538 = vweird.f32 %v438
    %vm539 = vweird.f32 %v533
    %vm540 = vmor %vm538, %vm539
    %v541 = vsel %vm540, %v533, %v537
    %v542 = vand.u32 2147483647, %v438
    %vm543 = vcmp.eq.f32.partialorder %v542, 8.507059e+37
    %v544 = vand.u32 %v438, 2147483648
    %v545 = vor.u32 1.1754944e-38, %v544
    %v546 = vsel %vm543, %v545, %v541
    %v547 = vmul.f32 %v372, %v546
    %v548 = vrcp.pop %v441
    %v549 = vmul.f32 %v441, %v548
    %v550 = vsub.f32 1.0, %v549
    %v551 = vmul.f32 %v548, %v550
    %v552 = vadd.f32 %v548, %v551
    %vm553 = vweird.f32 %v441
    %vm554 = vweird.f32 %v548
    %vm555 = vmor %vm553, %vm554
    %v556 = vsel %vm555, %v548, %v552
    %v557 = vand.u32 2147483647, %v441
    %vm558 = vcmp.eq.f32.partialorder %v557, 8.507059e+37
    %v559 = vand.u32 %v441, 2147483648
    %v560 = vor.u32 1.1754944e-38, %v559
    %v561 = vsel %vm558, %v560, %v556
    %v562 = vmul.f32 %v374, %v561
    %564 = vset.pattern.permute.xlu0 0
    %565 = vperm.xlu0 %564, %v457
    %v566 = vpop.permute.xlu0 %565
    %569 = vset.pattern.permute.xlu0 0
    %570 = vperm.xlu0 %569, %v472
    %v571 = vpop.permute.xlu0 %570
    %574 = vset.pattern.permute.xlu0 0
    %575 = vperm.xlu0 %574, %v487
    %v576 = vpop.permute.xlu0 %575
    %579 = vset.pattern.permute.xlu0 0
    %580 = vperm.xlu0 %579, %v502
    %v581 = vpop.permute.xlu0 %580
    %584 = vset.pattern.permute.xlu0 0
    %585 = vperm.xlu0 %584, %v517
    %v586 = vpop.permute.xlu0 %585
    %589 = vset.pattern.permute.xlu0 0
    %590 = vperm.xlu0 %589, %v532
    %v591 = vpop.permute.xlu0 %590
    %594 = vset.pattern.permute.xlu0 0
    %595 = vperm.xlu0 %594, %v547
    %v596 = vpop.permute.xlu0 %595
    %599 = vset.pattern.permute.xlu0 0
    %600 = vperm.xlu0 %599, %v562
    %v601 = vpop.permute.xlu0 %600
    %v603 = vmul.f32 %v40, %v566
    %v604 = vmul.f32 %v41, %v571
    %v605 = vmul.f32 %v42, %v576
    %v606 = vmul.f32 %v43, %v581
    %v607 = vmul.f32 %v44, %v586
    %v608 = vmul.f32 %v45, %v591
    %v609 = vmul.f32 %v46, %v596
    %v610 = vmul.f32 %v47, %v601
    %611 = vmatpush.msra.mxu0 0.0
    %612 = vmatpush.msra.mxu0 0.0
    %613 = vmatpush.msra.mxu0 0.0
    %614 = vmatpush.msra.mxu0 0.0
    %615 = vmatpush.msra.mxu0 0.0
    %616 = vmatpush.msra.mxu0 0.0
    %617 = vmatpush.msra.mxu0 0.0
    %618 = vmatpush.msra.mxu0 0.0
    %619 = vmatpush.msra.mxu0 %v610
    %620 = vmatpush.msra.mxu0 %v609
    %621 = vmatpush.msra.mxu0 %v608
    %622 = vmatpush.msra.mxu0 %v607
    %623 = vmatpush.msra.mxu0 %v606
    %624 = vmatpush.msra.mxu0 %v605
    %625 = vmatpush.msra.mxu0 %v604
    %626 = vmatpush.msra.mxu0 %v603
    %627 = vmatmul.f32.gmra.mxu0 %v377
    %v628 = vpop.f32.mrf.mxu0
    %v629 = vadd.f32 0.0, %v628
    %630 = vdwg.mxu0
    %vm631 = vcmask 257024
    %632 = vst.msk [vmem:[#allocation3] sm:$0xf] %vm631, %v629
    // Predicated region
    $region46: #{tpu_custom_call.1} parent=1 // pred_check
      _
    $region47: #{tpu_custom_call.1} parent=1 // pred_check_branch
      %634 = sbr.rel (0) target = $region49
    $region48: #{tpu_custom_call.1} parent=1 // pred_region
      %636 = vsyncadd [#allocation4], 0
      %s638 = sshll.u32 [#allocation3], 4
      %s639 = int_to_ptr.vmem [resolvable:$true] %s638
      %s640 = sshll.u32 %s11, 4
      %s641 = int_to_ptr.hbm [resolvable:$true] %s640
      %643 = dma.vmem_to_hbm [thread:$0]  %s639, 64, %s641, [#allocation4]
    $region49: #{tpu_custom_call.1} parent=1 // pred_fallthru
      _
    // Predicated region
    $region50: #{tpu_custom_call.1} parent=1 // pred_check
      _
    $region51: #{tpu_custom_call.1} parent=1 // pred_check_branch
      %645 = sbr.rel (0) target = $region53
    $region52: #{tpu_custom_call.1} parent=1 // pred_region
      %647 = dma.done [#allocation4], 64
    $region53: #{tpu_custom_call.1} parent=1 // pred_fallthru
      _
    %648 = vsyncpa [#allocation4], 1

</llo_original>
